<compile_context>
chip_gen: v7x
topology: tpu7x:2x2x1
jax: 0.10.0
libtpu: 0.0.40
codegen_flags: <defaults>
</compile_context>

<pallas_src>
import functools

import jax
import jax.numpy as jnp
from jax.experimental import pallas as pl
from jax.experimental.pallas import tpu as pltpu

BN_EPS = 1e-5


def conv_bn_flatten_kernel(x_ref, p_ref, o_ref, *, K, C, L_out):
    # x_ref: (TN, L) VMEM input rows.
    # p_ref: (K+3, C) SMEM scalar table, rows = [w_0 .. w_{K-1}, conv_bias, bn_scale, bn_shift].
    # o_ref: (TN, C, L_out) VMEM output; row-major (C, L_out) == PyTorch NCL flatten order.
    x = x_ref[...]
    # Hoist the K shifted views out of the channel loop: K lane-shifted copies, not C*K.
    xs = [x[:, k:k + L_out] for k in range(K)]
    for c in range(C):                        # C, K are small compile-time constants -> static unroll
        acc = p_ref[K, c] + p_ref[0, c] * xs[0]
        for k in range(1, K):                 # conv as K shifted FMAs on the VPU
            acc = acc + p_ref[k, c] * xs[k]
        acc = jnp.maximum(acc, 0.0)           # ReLU before BN, exactly as in ConvBlock.forward
        # Per-channel direct store: one channel result live at a time, no concat slab.
        o_ref[:, c, :] = acc * p_ref[K + 1, c] + p_ref[K + 2, c]   # eval-mode BN scale/shift


def _round_up(v, m):
    return (v + m - 1) // m * m


def _vmem_limit_bytes():
    """Chip-aware VMEM limit: ~56 MiB on v7x (64 MiB physical), ~112 MiB on v5e/v6e (128 MiB)."""
    cap = 64 * 1024 * 1024                            # conservative fallback = v7x per-TC VMEM
    try:
        info_fn = getattr(pltpu, "get_tpu_info", None)
        if info_fn is not None:
            cap = int(info_fn().vmem_capacity_bytes)
    except Exception:
        pass
    return min(cap - 8 * 1024 * 1024, 112 * 1024 * 1024)


def _pick_row_tile(N, L, C, L_out, vmem_limit):
    """Largest multiple-of-8 row tile with double-buffered in+out tiles under budget,
    capped at 1024 rows, and shrunk so the batch grid has >=2 tiles whenever possible."""
    bytes_per_row = 4 * (L + C * L_out)               # f32 input row + f32 output row
    budget = max(vmem_limit - 8 * 1024 * 1024, 1 * 1024 * 1024)
    tn_cap = max(8, (budget // (2 * bytes_per_row)) // 8 * 8)
    TN = min(1024, tn_cap)
    if N > 8:
        # Guarantee >=2 grid tiles so v7x's two TensorCores both get row tiles.
        TN = min(TN, max(8, _round_up(pl.cdiv(N, 2), 8)))
    else:
        TN = N                                        # block spans the full tiny batch (allowed)
    return TN


@jax.jit
def convblock_forward(x, params):
    """x: (N, L) float32 -> (N, C * (L - K + 1)) float32 (ConvBlock forward, eval mode)."""
    N, L = x.shape
    K, C = params["conv_w"].shape
    L_out = L - K + 1

    # Fold eval-mode BatchNorm1d (running stats) into a per-channel scale/shift.
    # TODO(synk): training-mode BatchNorm (batch statistics + running-stat updates) not implemented.
    scale = params["bn_gamma"] * jax.lax.rsqrt(params["bn_var"] + BN_EPS)
    shift = params["bn_beta"] - params["bn_mean"] * scale

    # Pack every per-channel scalar into one (K+3, C) SMEM table -> one tiny DMA descriptor.
    packed = jnp.concatenate(
        [params["conv_w"], params["conv_b"][None, :], scale[None, :], shift[None, :]], axis=0)

    vmem_limit = _vmem_limit_bytes()
    TN = _pick_row_tile(N, L, C, L_out, vmem_limit)

    out3 = pl.pallas_call(
        functools.partial(conv_bn_flatten_kernel, K=K, C=C, L_out=L_out),
        out_shape=jax.ShapeDtypeStruct((N, C, L_out), jnp.float32),
        grid=(pl.cdiv(N, TN),),                       # ragged last tile handled by Pallas (no jnp.pad)
        in_specs=[
            pl.BlockSpec((TN, L), lambda i: (i, 0)),
            pl.BlockSpec(memory_space=pltpu.MemorySpace.SMEM),   # whole scalar table, resident
        ],
        out_specs=pl.BlockSpec((TN, C, L_out), lambda i: (i, 0, 0)),
        compiler_params=pltpu.CompilerParams(
            dimension_semantics=("parallel",),        # row tiles shard across v7x's 2 TensorCores
            vmem_limit_bytes=vmem_limit,
        ),
    )(x, packed)
    # Contiguous (N, C, L_out) -> (N, C*L_out) is exactly PyTorch's NCL flatten order; free reshape.
    return out3.reshape(N, C * L_out)


def convblock_reference(x, params):
    """Pure-JAX reference mirroring ConvBlock.forward (eval mode)."""
    N, L = x.shape
    K, C = params["conv_w"].shape
    L_out = L - K + 1
    patches = jnp.stack([x[:, k:k + L_out] for k in range(K)], axis=-1)      # (N, L_out, K)
    y = jnp.einsum("ntk,kc->ntc", patches, params["conv_w"]) + params["conv_b"]
    y = jax.nn.relu(y)
    y = ((y - params["bn_mean"]) * jax.lax.rsqrt(params["bn_var"] + BN_EPS)
         * params["bn_gamma"] + params["bn_beta"])
    return y.transpose(0, 2, 1).reshape(N, C * L_out)                        # NCL flatten


if __name__ == "__main__":
    N, L = 2, 16      # batch, sequence length (ConvBlock input is (N, L); unsqueeze(1) -> 1 in-channel)
    K, C = 3, 4       # kernel_size, out_channels
    L_out = L - K + 1

    key = jax.random.PRNGKey(0)
    ks = jax.random.split(key, 7)
    params = {
        # Conv1d weight stored pre-transposed as (K, C) (PyTorch shape is (C, 1, K)).
        "conv_w":   0.3 * jax.random.normal(ks[0], (K, C), jnp.float32),
        "conv_b":   0.1 * jax.random.normal(ks[1], (C,), jnp.float32),
        "bn_gamma": 1.0 + 0.1 * jax.random.normal(ks[2], (C,), jnp.float32),
        "bn_beta":  0.1 * jax.random.normal(ks[3], (C,), jnp.float32),
        "bn_mean":  0.1 * jax.random.normal(ks[4], (C,), jnp.float32),
        "bn_var":   jax.random.uniform(ks[5], (C,), jnp.float32, 0.5, 1.5),
    }
    x = jax.random.normal(ks[6], (N, L), jnp.float32)

    out = jax.block_until_ready(convblock_forward(x, params))
    ref = convblock_reference(x, params)
    assert out.shape == (N, C * L_out), out.shape
    assert jnp.allclose(out, ref, atol=1e-4, rtol=1e-4), "Pallas output mismatch vs JAX reference"
    print("KERNEL_OK")
</pallas_src>

<mosaic_0001>
module attributes {stable_mosaic.version = 11 : i64} {
  func.func @conv_bn_flatten_kernel(%arg0: i32, %arg1: memref<2x16xf32, #tpu.memory_space<vmem>>, %arg2: memref<6x4xf32, #tpu.memory_space<smem>>, %arg3: memref<2x4x14xf32, #tpu.memory_space<vmem>>) attributes {dimension_semantics = [#tpu.dimension_semantics<parallel>], iteration_bounds = array<i64: 1>, scalar_prefetch = 0 : i64, scratch_operands = 0 : i64, tpu.core_type = #tpu.core_type<tc>, window_params = [{transform_indices = @transform_0, window_bounds = array<i64: 2, 16>}, {transform_indices = @transform_1, window_bounds = array<i64: 6, 4>}, {transform_indices = @transform_2, window_bounds = array<i64: 2, 4, 14>}]} {
    %c0 = arith.constant 0 : index
    %c0_0 = arith.constant 0 : index
    %0 = vector.load %arg1[%c0, %c0_0] : memref<2x16xf32, #tpu.memory_space<vmem>>, vector<2x16xf32>
    %1 = vector.extract_strided_slice %0 {offsets = [0, 0], sizes = [2, 14], strides = [1, 1]} : vector<2x16xf32> to vector<2x14xf32>
    %2 = vector.extract_strided_slice %0 {offsets = [0, 1], sizes = [2, 14], strides = [1, 1]} : vector<2x16xf32> to vector<2x14xf32>
    %3 = vector.extract_strided_slice %0 {offsets = [0, 2], sizes = [2, 14], strides = [1, 1]} : vector<2x16xf32> to vector<2x14xf32>
    %c3 = arith.constant 3 : index
    %c0_1 = arith.constant 0 : index
    %4 = memref.load %arg2[%c3, %c0_1] : memref<6x4xf32, #tpu.memory_space<smem>>
    %c0_2 = arith.constant 0 : index
    %c0_3 = arith.constant 0 : index
    %5 = memref.load %arg2[%c0_2, %c0_3] : memref<6x4xf32, #tpu.memory_space<smem>>
    %6 = vector.broadcast %5 : f32 to vector<2x14xf32>
    %7 = arith.mulf %6, %1 : vector<2x14xf32>
    %8 = vector.broadcast %4 : f32 to vector<2x14xf32>
    %9 = arith.addf %8, %7 : vector<2x14xf32>
    %c1 = arith.constant 1 : index
    %c0_4 = arith.constant 0 : index
    %10 = memref.load %arg2[%c1, %c0_4] : memref<6x4xf32, #tpu.memory_space<smem>>
    %11 = vector.broadcast %10 : f32 to vector<2x14xf32>
    %12 = arith.mulf %11, %2 : vector<2x14xf32>
    %13 = arith.addf %9, %12 : vector<2x14xf32>
    %c2 = arith.constant 2 : index
    %c0_5 = arith.constant 0 : index
    %14 = memref.load %arg2[%c2, %c0_5] : memref<6x4xf32, #tpu.memory_space<smem>>
    %15 = vector.broadcast %14 : f32 to vector<2x14xf32>
    %16 = arith.mulf %15, %3 : vector<2x14xf32>
    %17 = arith.addf %13, %16 : vector<2x14xf32>
    %cst = arith.constant 0.000000e+00 : f32
    %18 = vector.broadcast %cst : f32 to vector<2x14xf32>
    %19 = arith.maximumf %17, %18 : vector<2x14xf32>
    %c4 = arith.constant 4 : index
    %c0_6 = arith.constant 0 : index
    %20 = memref.load %arg2[%c4, %c0_6] : memref<6x4xf32, #tpu.memory_space<smem>>
    %21 = vector.broadcast %20 : f32 to vector<2x14xf32>
    %22 = arith.mulf %19, %21 : vector<2x14xf32>
    %c5 = arith.constant 5 : index
    %c0_7 = arith.constant 0 : index
    %23 = memref.load %arg2[%c5, %c0_7] : memref<6x4xf32, #tpu.memory_space<smem>>
    %24 = vector.broadcast %23 : f32 to vector<2x14xf32>
    %25 = arith.addf %22, %24 : vector<2x14xf32>
    %c0_8 = arith.constant 0 : index
    %c0_9 = arith.constant 0 : index
    %c0_10 = arith.constant 0 : index
    %26 = vector.load %arg3[%c0_8, %c0_9, %c0_10] : memref<2x4x14xf32, #tpu.memory_space<vmem>>, vector<2x1x14xf32>
    %27 = vector.shape_cast %26 : vector<2x1x14xf32> to vector<2x14xf32>
    %28 = vector.shape_cast %25 : vector<2x14xf32> to vector<2x1x14xf32>
    tpu.vector_store %arg3[%c0_8, %c0_9, %c0_10], %28 {strides = array<i32>} : memref<2x4x14xf32, #tpu.memory_space<vmem>>, vector<2x1x14xf32>,
    %c3_11 = arith.constant 3 : index
    %c1_12 = arith.constant 1 : index
    %29 = memref.load %arg2[%c3_11, %c1_12] : memref<6x4xf32, #tpu.memory_space<smem>>
    %c0_13 = arith.constant 0 : index
    %c1_14 = arith.constant 1 : index
    %30 = memref.load %arg2[%c0_13, %c1_14] : memref<6x4xf32, #tpu.memory_space<smem>>
    %31 = vector.broadcast %30 : f32 to vector<2x14xf32>
    %32 = arith.mulf %31, %1 : vector<2x14xf32>
    %33 = vector.broadcast %29 : f32 to vector<2x14xf32>
    %34 = arith.addf %33, %32 : vector<2x14xf32>
    %c1_15 = arith.constant 1 : index
    %c1_16 = arith.constant 1 : index
    %35 = memref.load %arg2[%c1_15, %c1_16] : memref<6x4xf32, #tpu.memory_space<smem>>
    %36 = vector.broadcast %35 : f32 to vector<2x14xf32>
    %37 = arith.mulf %36, %2 : vector<2x14xf32>
    %38 = arith.addf %34, %37 : vector<2x14xf32>
    %c2_17 = arith.constant 2 : index
    %c1_18 = arith.constant 1 : index
    %39 = memref.load %arg2[%c2_17, %c1_18] : memref<6x4xf32, #tpu.memory_space<smem>>
    %40 = vector.broadcast %39 : f32 to vector<2x14xf32>
    %41 = arith.mulf %40, %3 : vector<2x14xf32>
    %42 = arith.addf %38, %41 : vector<2x14xf32>
    %cst_19 = arith.constant 0.000000e+00 : f32
    %43 = vector.broadcast %cst_19 : f32 to vector<2x14xf32>
    %44 = arith.maximumf %42, %43 : vector<2x14xf32>
    %c4_20 = arith.constant 4 : index
    %c1_21 = arith.constant 1 : index
    %45 = memref.load %arg2[%c4_20, %c1_21] : memref<6x4xf32, #tpu.memory_space<smem>>
    %46 = vector.broadcast %45 : f32 to vector<2x14xf32>
    %47 = arith.mulf %44, %46 : vector<2x14xf32>
    %c5_22 = arith.constant 5 : index
    %c1_23 = arith.constant 1 : index
    %48 = memref.load %arg2[%c5_22, %c1_23] : memref<6x4xf32, #tpu.memory_space<smem>>
    %49 = vector.broadcast %48 : f32 to vector<2x14xf32>
    %50 = arith.addf %47, %49 : vector<2x14xf32>
    %c0_24 = arith.constant 0 : index
    %c1_25 = arith.constant 1 : index
    %c0_26 = arith.constant 0 : index
    %51 = vector.load %arg3[%c0_24, %c1_25, %c0_26] : memref<2x4x14xf32, #tpu.memory_space<vmem>>, vector<2x1x14xf32>
    %52 = vector.shape_cast %51 : vector<2x1x14xf32> to vector<2x14xf32>
    %53 = vector.shape_cast %50 : vector<2x14xf32> to vector<2x1x14xf32>
    tpu.vector_store %arg3[%c0_24, %c1_25, %c0_26], %53 {strides = array<i32>} : memref<2x4x14xf32, #tpu.memory_space<vmem>>, vector<2x1x14xf32>,
    %c3_27 = arith.constant 3 : index
    %c2_28 = arith.constant 2 : index
    %54 = memref.load %arg2[%c3_27, %c2_28] : memref<6x4xf32, #tpu.memory_space<smem>>
    %c0_29 = arith.constant 0 : index
    %c2_30 = arith.constant 2 : index
    %55 = memref.load %arg2[%c0_29, %c2_30] : memref<6x4xf32, #tpu.memory_space<smem>>
    %56 = vector.broadcast %55 : f32 to vector<2x14xf32>
    %57 = arith.mulf %56, %1 : vector<2x14xf32>
    %58 = vector.broadcast %54 : f32 to vector<2x14xf32>
    %59 = arith.addf %58, %57 : vector<2x14xf32>
    %c1_31 = arith.constant 1 : index
    %c2_32 = arith.constant 2 : index
    %60 = memref.load %arg2[%c1_31, %c2_32] : memref<6x4xf32, #tpu.memory_space<smem>>
    %61 = vector.broadcast %60 : f32 to vector<2x14xf32>
    %62 = arith.mulf %61, %2 : vector<2x14xf32>
    %63 = arith.addf %59, %62 : vector<2x14xf32>
    %c2_33 = arith.constant 2 : index
    %c2_34 = arith.constant 2 : index
    %64 = memref.load %arg2[%c2_33, %c2_34] : memref<6x4xf32, #tpu.memory_space<smem>>
    %65 = vector.broadcast %64 : f32 to vector<2x14xf32>
    %66 = arith.mulf %65, %3 : vector<2x14xf32>
    %67 = arith.addf %63, %66 : vector<2x14xf32>
    %cst_35 = arith.constant 0.000000e+00 : f32
    %68 = vector.broadcast %cst_35 : f32 to vector<2x14xf32>
    %69 = arith.maximumf %67, %68 : vector<2x14xf32>
    %c4_36 = arith.constant 4 : index
    %c2_37 = arith.constant 2 : index
    %70 = memref.load %arg2[%c4_36, %c2_37] : memref<6x4xf32, #tpu.memory_space<smem>>
    %71 = vector.broadcast %70 : f32 to vector<2x14xf32>
    %72 = arith.mulf %69, %71 : vector<2x14xf32>
    %c5_38 = arith.constant 5 : index
    %c2_39 = arith.constant 2 : index
    %73 = memref.load %arg2[%c5_38, %c2_39] : memref<6x4xf32, #tpu.memory_space<smem>>
    %74 = vector.broadcast %73 : f32 to vector<2x14xf32>
    %75 = arith.addf %72, %74 : vector<2x14xf32>
    %c0_40 = arith.constant 0 : index
    %c2_41 = arith.constant 2 : index
    %c0_42 = arith.constant 0 : index
    %76 = vector.load %arg3[%c0_40, %c2_41, %c0_42] : memref<2x4x14xf32, #tpu.memory_space<vmem>>, vector<2x1x14xf32>
    %77 = vector.shape_cast %76 : vector<2x1x14xf32> to vector<2x14xf32>
    %78 = vector.shape_cast %75 : vector<2x14xf32> to vector<2x1x14xf32>
    tpu.vector_store %arg3[%c0_40, %c2_41, %c0_42], %78 {strides = array<i32>} : memref<2x4x14xf32, #tpu.memory_space<vmem>>, vector<2x1x14xf32>,
    %c3_43 = arith.constant 3 : index
    %c3_44 = arith.constant 3 : index
    %79 = memref.load %arg2[%c3_43, %c3_44] : memref<6x4xf32, #tpu.memory_space<smem>>
    %c0_45 = arith.constant 0 : index
    %c3_46 = arith.constant 3 : index
    %80 = memref.load %arg2[%c0_45, %c3_46] : memref<6x4xf32, #tpu.memory_space<smem>>
    %81 = vector.broadcast %80 : f32 to vector<2x14xf32>
    %82 = arith.mulf %81, %1 : vector<2x14xf32>
    %83 = vector.broadcast %79 : f32 to vector<2x14xf32>
    %84 = arith.addf %83, %82 : vector<2x14xf32>
    %c1_47 = arith.constant 1 : index
    %c3_48 = arith.constant 3 : index
    %85 = memref.load %arg2[%c1_47, %c3_48] : memref<6x4xf32, #tpu.memory_space<smem>>
    %86 = vector.broadcast %85 : f32 to vector<2x14xf32>
    %87 = arith.mulf %86, %2 : vector<2x14xf32>
    %88 = arith.addf %84, %87 : vector<2x14xf32>
    %c2_49 = arith.constant 2 : index
    %c3_50 = arith.constant 3 : index
    %89 = memref.load %arg2[%c2_49, %c3_50] : memref<6x4xf32, #tpu.memory_space<smem>>
    %90 = vector.broadcast %89 : f32 to vector<2x14xf32>
    %91 = arith.mulf %90, %3 : vector<2x14xf32>
    %92 = arith.addf %88, %91 : vector<2x14xf32>
    %cst_51 = arith.constant 0.000000e+00 : f32
    %93 = vector.broadcast %cst_51 : f32 to vector<2x14xf32>
    %94 = arith.maximumf %92, %93 : vector<2x14xf32>
    %c4_52 = arith.constant 4 : index
    %c3_53 = arith.constant 3 : index
    %95 = memref.load %arg2[%c4_52, %c3_53] : memref<6x4xf32, #tpu.memory_space<smem>>
    %96 = vector.broadcast %95 : f32 to vector<2x14xf32>
    %97 = arith.mulf %94, %96 : vector<2x14xf32>
    %c5_54 = arith.constant 5 : index
    %c3_55 = arith.constant 3 : index
    %98 = memref.load %arg2[%c5_54, %c3_55] : memref<6x4xf32, #tpu.memory_space<smem>>
    %99 = vector.broadcast %98 : f32 to vector<2x14xf32>
    %100 = arith.addf %97, %99 : vector<2x14xf32>
    %c0_56 = arith.constant 0 : index
    %c3_57 = arith.constant 3 : index
    %c0_58 = arith.constant 0 : index
    %101 = vector.load %arg3[%c0_56, %c3_57, %c0_58] : memref<2x4x14xf32, #tpu.memory_space<vmem>>, vector<2x1x14xf32>
    %102 = vector.shape_cast %101 : vector<2x1x14xf32> to vector<2x14xf32>
    %103 = vector.shape_cast %100 : vector<2x14xf32> to vector<2x1x14xf32>
    tpu.vector_store %arg3[%c0_56, %c3_57, %c0_58], %103 {strides = array<i32>} : memref<2x4x14xf32, #tpu.memory_space<vmem>>, vector<2x1x14xf32>,
    return
  }
  func.func @transform_0(%arg0: i32) -> (i32, i32) {
    %c0_i32 = arith.constant 0 : i32
    %c0_i32_0 = arith.constant 0 : i32
    return %arg0, %c0_i32 : i32, i32
  }
  func.func @transform_1(%arg0: i32) -> (i32, i32) {
    %c0_i32 = arith.constant 0 : i32
    %c0_i32_0 = arith.constant 0 : i32
    %c0_i32_1 = arith.constant 0 : i32
    return %c0_i32, %c0_i32_0 : i32, i32
  }
  func.func @transform_2(%arg0: i32) -> (i32, i32, i32) {
    %c0_i32 = arith.constant 0 : i32
    %c0_i32_0 = arith.constant 0 : i32
    %c0_i32_1 = arith.constant 0 : i32
    return %arg0, %c0_i32, %c0_i32_0 : i32, i32, i32
  }
}

</mosaic_0001>

<llo_original>
// kernel: convblock_forward.1
$region0: #{convblock_forward.1}
  #allocation0 [shape = 'u32[]', space=smem, size = 0x4, offset = 0x4, fixed_abs, tag = 'smem constant byte address 0x4 - core index']
  #allocation1 [shape = 'u32[144,128]{1,0:T(1,128)}', space=vmem, size = 0x12000, scoped, tag = 'internal scratch']
  %s0 = inlined_call_operand.vmem [shape: f32[2,16], index: 0, kind: input, shape index: {}]
  %s1 = inlined_call_operand.vmem [shape: f32[6,4], index: 1, kind: input, shape index: {}]
  %s2 = inlined_call_operand.vmem [shape: f32[2,4,14], index: 2, kind: output, shape index: {}]
  %s3 = sld [smem:[#allocation0]]
  $region22: #{convblock_forward.1} parent=0
    _
  %s5 = ssub.s32 1, %s3
  %s6 = scalar_select 0, %s5, %s3
  $region1: #{convblock_forward.1} parent=0
    #allocation2 [shape = 'u8[4096]{0}', space=smem, size = 0x1000, scoped, tag = 'input window, operand 1, single buffered']
    #allocation3 [shape = 's32[1]{0}', space=sflag, size = 0x4, scoped, tag = 'scoped memory for convblock_forward.1']
    %7 = vsyncpa [#allocation3], 0
    // Predicated region
    $region2: #{convblock_forward.1} parent=1 // pred_check
      _
    $region3: #{convblock_forward.1} parent=1 // pred_check_branch
      %9 = sbr.rel (0) target = $region5
    $region4: #{convblock_forward.1} parent=1 // pred_region
      _
    $region5: #{convblock_forward.1} parent=1 // pred_fallthru
      _
    // Predicated region
    $region6: #{convblock_forward.1} parent=1 // pred_check
      _
    $region7: #{convblock_forward.1} parent=1 // pred_check_branch
      %11 = sbr.rel (0) target = $region9
    $region8: #{convblock_forward.1} parent=1 // pred_region
      %s13 = ssub.s32 128, 128
      %14 = vsyncadd [#allocation3], %s13
      %s16 = sshll.u32 %s1, 4
      %s17 = int_to_ptr.vmem [resolvable:$true] %s16
      %19 = dma.vmem_to_smem %s17, 128, [#allocation2], [#allocation3]
    $region9: #{convblock_forward.1} parent=1 // pred_fallthru
      _
    // Predicated region
    $region10: #{convblock_forward.1} parent=1 // pred_check
      _
    $region11: #{convblock_forward.1} parent=1 // pred_check_branch
      %21 = sbr.rel (0) target = $region13
    $region12: #{convblock_forward.1} parent=1 // pred_region
      %22 = dma.done [#allocation3], 128
    $region13: #{convblock_forward.1} parent=1 // pred_fallthru
      _
    %23 = sfence
    %v24 = vld [vmem:[%s0] sm:$0x3]
    %s25 = sld [smem:[#allocation2 + $0x180]]
    %s26 = sld [smem:[#allocation2]]
    %v27 = vstv %s26
    %v28 = vmul.f32 %v27, %v24
    %v29 = vstv %s25
    %v30 = vadd.f32 %v29, %v28
    %s31 = sld [smem:[#allocation2 + $0x80]]
    %v32 = vstv %s31
    %v33 = vmul.f32 %v32, %v24
    %35 = vrot.lane.b32.xlu0 %v33, 127
    %v36 = vpop.permute.xlu0 %35
    %v38 = vadd.f32 %v30, %v36
    %s39 = sld [smem:[#allocation2 + $0x100]]
    %v40 = vstv %s39
    %v41 = vmul.f32 %v40, %v24
    %43 = vrot.lane.b32.xlu0 %v41, 126
    %v44 = vpop.permute.xlu0 %43
    %v46 = vadd.f32 %v38, %v44
    %v47 = vmax.f32 %v46, 0.0
    %s48 = sld [smem:[#allocation2 + $0x200]]
    %v49 = vstv %s48
    %v50 = vmul.f32 %v47, %v49
    %s51 = sld [smem:[#allocation2 + $0x280]]
    %v52 = vstv %s51
    %v53 = vadd.f32 %v50, %v52
    %v56 = vunpack.c.l.s4 1966171168
    %v57 = vunpack.c.0.s8 %v56
    %v58 = vlaneseq
    %v59 = vshrl.u32 %v58, 7
    %v60 = vsub.s32 %v57, %v59
    %v61 = vrot.slane %v53, %v60
    %v62 = vcombine.high %v61, %v61
    %v64 = vunpack.c.l.s4 1966171168
    %v65 = vunpack.c.0.s8 %v64
    %v66 = vlaneseq
    %v67 = vshrl.u32 %v66, 7
    %v68 = vsub.s32 %v65, %v67
    %v69 = vrot.slane %v61, %v68
    %v71 = vunpack.c.l.s4 1966171168
    %v72 = vunpack.c.0.s8 %v71
    %v73 = vlaneseq
    %v74 = vshrl.u32 %v73, 7
    %v75 = vsub.s32 %v72, %v74
    %v76 = vrot.slane %v62, %v75
    %vm79 = vcmask 106496
    %80 = vst.msk [vmem:[%s2] sm:$0x1] %vm79, %v69
    %81 = vst.msk [vmem:[%s2 + $0x4] sm:$0x1] %vm79, %v76
    %s82 = sld [smem:[#allocation2 + $0x181]]
    %s83 = sld [smem:[#allocation2 + $0x1]]
    %v84 = vstv %s83
    %v85 = vmul.f32 %v84, %v24
    %v86 = vstv %s82
    %v87 = vadd.f32 %v86, %v85
    %s88 = sld [smem:[#allocation2 + $0x81]]
    %v89 = vstv %s88
    %v90 = vmul.f32 %v89, %v24
    %92 = vrot.lane.b32.xlu0 %v90, 127
    %v93 = vpop.permute.xlu0 %92
    %v95 = vadd.f32 %v87, %v93
    %s96 = sld [smem:[#allocation2 + $0x101]]
    %v97 = vstv %s96
    %v98 = vmul.f32 %v97, %v24
    %100 = vrot.lane.b32.xlu0 %v98, 126
    %v101 = vpop.permute.xlu0 %100
    %v103 = vadd.f32 %v95, %v101
    %v104 = vmax.f32 %v103, 0.0
    %s105 = sld [smem:[#allocation2 + $0x201]]
    %v106 = vstv %s105
    %v107 = vmul.f32 %v104, %v106
    %s108 = sld [smem:[#allocation2 + $0x281]]
    %v109 = vstv %s108
    %v110 = vadd.f32 %v107, %v109
    %v113 = vunpack.c.l.s4 1966171168
    %v114 = vunpack.c.0.s8 %v113
    %v115 = vlaneseq
    %v116 = vshrl.u32 %v115, 7
    %v117 = vsub.s32 %v114, %v116
    %v118 = vrot.slane %v110, %v117
    %v119 = vcombine.high %v118, %v118
    %v121 = vunpack.c.l.s4 1966171168
    %v122 = vunpack.c.0.s8 %v121
    %v123 = vlaneseq
    %v124 = vshrl.u32 %v123, 7
    %v125 = vsub.s32 %v122, %v124
    %v126 = vrot.slane %v118, %v125
    %v128 = vunpack.c.l.s4 1966171168
    %v129 = vunpack.c.0.s8 %v128
    %v130 = vlaneseq
    %v131 = vshrl.u32 %v130, 7
    %v132 = vsub.s32 %v129, %v131
    %v133 = vrot.slane %v119, %v132
    %136 = vst.msk [vmem:[%s2 + $0x1] sm:$0x1] %vm79, %v126
    %137 = vst.msk [vmem:[%s2 + $0x5] sm:$0x1] %vm79, %v133
    %s138 = sld [smem:[#allocation2 + $0x182]]
    %s139 = sld [smem:[#allocation2 + $0x2]]
    %v140 = vstv %s139
    %v141 = vmul.f32 %v140, %v24
    %v142 = vstv %s138
    %v143 = vadd.f32 %v142, %v141
    %s144 = sld [smem:[#allocation2 + $0x82]]
    %v145 = vstv %s144
    %v146 = vmul.f32 %v145, %v24
    %148 = vrot.lane.b32.xlu0 %v146, 127
    %v149 = vpop.permute.xlu0 %148
    %v151 = vadd.f32 %v143, %v149
    %s152 = sld [smem:[#allocation2 + $0x102]]
    %v153 = vstv %s152
    %v154 = vmul.f32 %v153, %v24
    %156 = vrot.lane.b32.xlu0 %v154, 126
    %v157 = vpop.permute.xlu0 %156
    %v159 = vadd.f32 %v151, %v157
    %v160 = vmax.f32 %v159, 0.0
    %s161 = sld [smem:[#allocation2 + $0x202]]
    %v162 = vstv %s161
    %v163 = vmul.f32 %v160, %v162
    %s164 = sld [smem:[#allocation2 + $0x282]]
    %v165 = vstv %s164
    %v166 = vadd.f32 %v163, %v165
    %v169 = vunpack.c.l.s4 1966171168
    %v170 = vunpack.c.0.s8 %v169
    %v171 = vlaneseq
    %v172 = vshrl.u32 %v171, 7
    %v173 = vsub.s32 %v170, %v172
    %v174 = vrot.slane %v166, %v173
    %v175 = vcombine.high %v174, %v174
    %v177 = vunpack.c.l.s4 1966171168
    %v178 = vunpack.c.0.s8 %v177
    %v179 = vlaneseq
    %v180 = vshrl.u32 %v179, 7
    %v181 = vsub.s32 %v178, %v180
    %v182 = vrot.slane %v174, %v181
    %v184 = vunpack.c.l.s4 1966171168
    %v185 = vunpack.c.0.s8 %v184
    %v186 = vlaneseq
    %v187 = vshrl.u32 %v186, 7
    %v188 = vsub.s32 %v185, %v187
    %v189 = vrot.slane %v175, %v188
    %192 = vst.msk [vmem:[%s2 + $0x2] sm:$0x1] %vm79, %v182
    %193 = vst.msk [vmem:[%s2 + $0x6] sm:$0x1] %vm79, %v189
    %s194 = sld [smem:[#allocation2 + $0x183]]
    %s195 = sld [smem:[#allocation2 + $0x3]]
    %v196 = vstv %s195
    %v197 = vmul.f32 %v196, %v24
    %v198 = vstv %s194
    %v199 = vadd.f32 %v198, %v197
    %s200 = sld [smem:[#allocation2 + $0x83]]
    %v201 = vstv %s200
    %v202 = vmul.f32 %v201, %v24
    %204 = vrot.lane.b32.xlu0 %v202, 127
    %v205 = vpop.permute.xlu0 %204
    %v207 = vadd.f32 %v199, %v205
    %s208 = sld [smem:[#allocation2 + $0x103]]
    %v209 = vstv %s208
    %v210 = vmul.f32 %v209, %v24
    %212 = vrot.lane.b32.xlu0 %v210, 126
    %v213 = vpop.permute.xlu0 %212
    %v215 = vadd.f32 %v207, %v213
    %v216 = vmax.f32 %v215, 0.0
    %s217 = sld [smem:[#allocation2 + $0x203]]
    %v218 = vstv %s217
    %v219 = vmul.f32 %v216, %v218
    %s220 = sld [smem:[#allocation2 + $0x283]]
    %v221 = vstv %s220
    %v222 = vadd.f32 %v219, %v221
    %v225 = vunpack.c.l.s4 1966171168
    %v226 = vunpack.c.0.s8 %v225
    %v227 = vlaneseq
    %v228 = vshrl.u32 %v227, 7
    %v229 = vsub.s32 %v226, %v228
    %v230 = vrot.slane %v222, %v229
    %v231 = vcombine.high %v230, %v230
    %v233 = vunpack.c.l.s4 1966171168
    %v234 = vunpack.c.0.s8 %v233
    %v235 = vlaneseq
    %v236 = vshrl.u32 %v235, 7
    %v237 = vsub.s32 %v234, %v236
    %v238 = vrot.slane %v230, %v237
    %v240 = vunpack.c.l.s4 1966171168
    %v241 = vunpack.c.0.s8 %v240
    %v242 = vlaneseq
    %v243 = vshrl.u32 %v242, 7
    %v244 = vsub.s32 %v241, %v243
    %v245 = vrot.slane %v231, %v244
    %248 = vst.msk [vmem:[%s2 + $0x3] sm:$0x1] %vm79, %v238
    %249 = vst.msk [vmem:[%s2 + $0x7] sm:$0x1] %vm79, %v245
    // Predicated region
    $region14: #{convblock_forward.1} parent=1 // pred_check
      _
    $region15: #{convblock_forward.1} parent=1 // pred_check_branch
      %251 = sbr.rel (0) target = $region17
    $region16: #{convblock_forward.1} parent=1 // pred_region
      _
    $region17: #{convblock_forward.1} parent=1 // pred_fallthru
      _
    // Predicated region
    $region18: #{convblock_forward.1} parent=1 // pred_check
      _
    $region19: #{convblock_forward.1} parent=1 // pred_check_branch
      %253 = sbr.rel (0) target = $region21
    $region20: #{convblock_forward.1} parent=1 // pred_region
      _
    $region21: #{convblock_forward.1} parent=1 // pred_fallthru
      _
    %254 = vsyncpa [#allocation3], 1

</llo_original>
